<compile_context>
chip_gen: v7x
topology: tpu7x:2x2x1
jax: 0.10.0
libtpu: 0.0.40
codegen_flags: <defaults>
</compile_context>

<pallas_src>
import jax
import jax.numpy as jnp
from jax.experimental import pallas as pl
from jax.experimental.pallas import tpu as pltpu


def _depthregression_kernel(d_ref, x_ref, o_ref):
    # d_ref: (1, D, 1) f32 VMEM depth column for this batch
    # x_ref: (1, D, T)  VMEM tile of the flattened (B, D, H*W) input
    # o_ref: (1, 1, T)  VMEM tile of the flattened (B, 1, H*W) output
    w = d_ref[0]          # (D, 1) f32
    x = x_ref[0]          # (D, T) in input dtype

    if x.dtype == jnp.bfloat16:
        # v5e VPU/EUP has no bf16: contract over D on the MXU (trans-LHS dot),
        # f32 accumulation.  (Trace-time branch; only taken for bf16 inputs.)
        o = jax.lax.dot_general(
            w.astype(jnp.bfloat16), x,
            dimension_numbers=(((0,), (0,)), ((), ())),
            preferred_element_type=jnp.float32)                      # (1, T)
    else:
        # Dense sublane reduction: full-vreg VPU multiply + XLU sublane sum.
        o = jnp.sum(x.astype(jnp.float32) * w, axis=0, keepdims=True)  # (1, T)

    o_ref[0] = o.astype(o_ref.dtype)  # single lane-dense store


def _pick_tile(hw, d, dtype_bytes):
    """Lane tile along flattened H*W, sized to keep double-buffered x under VMEM."""
    per_buffer_budget = 8 * 1024 * 1024        # bytes of x per pipeline buffer
    t = per_buffer_budget // max(1, d * dtype_bytes)
    t = min(int(t), 32768)                     # mem-bound; no gain past this
    t = max(128, (t // 128) * 128)             # lane-aligned
    if hw <= t:
        return hw                              # full extent: always a legal block
    return t


def depthregression(x, depths, *, tile=None):
    """x: (B, D, H, W). depths: (B, D). Returns (B, H, W) = sum_d x * depths."""
    B, D, H, W = x.shape
    assert depths.shape == (B, D)
    HW = H * W
    dtype_bytes = jnp.dtype(x.dtype).itemsize
    if tile is None:
        tile = _pick_tile(HW, D, dtype_bytes)
    num_t = pl.cdiv(HW, tile)

    x3 = x.reshape(B, D, HW)
    d_col = depths.astype(jnp.float32).reshape(B, D, 1)

    out = pl.pallas_call(
        _depthregression_kernel,
        out_shape=jax.ShapeDtypeStruct((B, 1, HW), x.dtype),
        grid_spec=pltpu.PrefetchScalarGridSpec(
            num_scalar_prefetch=0,
            grid=(num_t, B),   # many-tile axis leading -> megacore shards tiles
            in_specs=[
                pl.BlockSpec((1, D, 1), lambda t, b: (b, 0, 0)),     # depth column
                pl.BlockSpec((1, D, tile), lambda t, b: (b, 0, t)),  # x tile
            ],
            out_specs=pl.BlockSpec((1, 1, tile), lambda t, b: (b, 0, t)),
        ),
        compiler_params=pltpu.CompilerParams(
            dimension_semantics=("parallel", "parallel"),
            # Required on v5e (16 MiB scoped default); safe on v6e/v7x.
            vmem_limit_bytes=32 * 1024 * 1024,
        ),
    )(d_col, x3)
    return out.reshape(B, H, W)


def _reference(x, depths):
    return jnp.sum(x * depths[:, :, None, None], axis=1)


if __name__ == "__main__":
    key = jax.random.PRNGKey(0)

    # --- Case 1: small shapes consistent with the module's forward ---
    B, D, H, W = 2, 4, 16, 16
    kx, kd, key = jax.random.split(key, 3)
    x = jax.random.normal(kx, (B, D, H, W), dtype=jnp.float32)
    depths = jnp.tile(jnp.linspace(1.0, 4.0, D, dtype=jnp.float32)[None, :], (B, 1))
    depths = depths + 0.01 * jax.random.normal(kd, (B, D), dtype=jnp.float32)

    out = jax.block_until_ready(depthregression(x, depths))
    ref = _reference(x, depths)
    assert out.shape == (B, H, W)
    assert jnp.allclose(out, ref, atol=1e-5, rtol=1e-5), "case 1 mismatch vs reference"

    # --- Case 2: exercise the multi-tile path (forced small tile, partial last tile) ---
    B2, D2, H2, W2 = 2, 4, 16, 20             # HW = 320 -> 3 tiles of 128 (last partial)
    kx2, kd2, key = jax.random.split(key, 3)
    x2 = jax.random.normal(kx2, (B2, D2, H2, W2), dtype=jnp.float32)
    depths2 = 1.0 + jax.random.uniform(kd2, (B2, D2), dtype=jnp.float32)

    out2 = jax.block_until_ready(depthregression(x2, depths2, tile=128))
    ref2 = _reference(x2, depths2)
    assert out2.shape == (B2, H2, W2)
    assert jnp.allclose(out2, ref2, atol=1e-5, rtol=1e-5), "case 2 mismatch vs reference"

    print("KERNEL_OK")
</pallas_src>

<mosaic_0001>
module attributes {stable_mosaic.version = 11 : i64} {
  func.func @_depthregression_kernel(%arg0: i32, %arg1: i32, %arg2: memref<1x4x1xf32, #tpu.memory_space<vmem>>, %arg3: memref<1x4x256xf32, #tpu.memory_space<vmem>>, %arg4: memref<1x1x256xf32, #tpu.memory_space<vmem>>) attributes {dimension_semantics = [#tpu.dimension_semantics<parallel>, #tpu.dimension_semantics<parallel>], iteration_bounds = array<i64: 1, 2>, scalar_prefetch = 0 : i64, scratch_operands = 0 : i64, tpu.core_type = #tpu.core_type<tc>, window_params = [{transform_indices = @transform_0, window_bounds = array<i64: 1, 4, 1>}, {transform_indices = @transform_1, window_bounds = array<i64: 1, 4, 256>}, {transform_indices = @transform_2, window_bounds = array<i64: 1, 1, 256>}]} {
    %c0 = arith.constant 0 : index
    %c0_0 = arith.constant 0 : index
    %c0_1 = arith.constant 0 : index
    %0 = vector.load %arg2[%c0, %c0_0, %c0_1] : memref<1x4x1xf32, #tpu.memory_space<vmem>>, vector<1x4x1xf32>
    %1 = vector.shape_cast %0 : vector<1x4x1xf32> to vector<4x1xf32>
    %c0_2 = arith.constant 0 : index
    %c0_3 = arith.constant 0 : index
    %c0_4 = arith.constant 0 : index
    %2 = vector.load %arg3[%c0_2, %c0_3, %c0_4] : memref<1x4x256xf32, #tpu.memory_space<vmem>>, vector<1x4x256xf32>
    %3 = vector.shape_cast %2 : vector<1x4x256xf32> to vector<4x256xf32>
    %4 = vector.broadcast %1 : vector<4x1xf32> to vector<4x256xf32>
    %5 = arith.mulf %3, %4 : vector<4x256xf32>
    %cst = arith.constant dense<0.000000e+00> : vector<256xf32>
    %6 = vector.multi_reduction <add>, %5, %cst [0] : vector<4x256xf32> to vector<256xf32>
    %7 = vector.shape_cast %6 : vector<256xf32> to vector<1x256xf32>
    %c0_5 = arith.constant 0 : index
    %c0_6 = arith.constant 0 : index
    %c0_7 = arith.constant 0 : index
    %8 = vector.load %arg4[%c0_5, %c0_6, %c0_7] : memref<1x1x256xf32, #tpu.memory_space<vmem>>, vector<1x1x256xf32>
    %9 = vector.shape_cast %8 : vector<1x1x256xf32> to vector<1x256xf32>
    %10 = vector.shape_cast %7 : vector<1x256xf32> to vector<1x1x256xf32>
    tpu.vector_store %arg4[%c0_5, %c0_6, %c0_7], %10 {strides = array<i32>} : memref<1x1x256xf32, #tpu.memory_space<vmem>>, vector<1x1x256xf32>,
    return
  }
  func.func @transform_0(%arg0: i32, %arg1: i32) -> (i32, i32, i32) {
    %c0_i32 = arith.constant 0 : i32
    %c0_i32_0 = arith.constant 0 : i32
    %c0_i32_1 = arith.constant 0 : i32
    return %arg1, %c0_i32, %c0_i32_0 : i32, i32, i32
  }
  func.func @transform_1(%arg0: i32, %arg1: i32) -> (i32, i32, i32) {
    %c0_i32 = arith.constant 0 : i32
    %c0_i32_0 = arith.constant 0 : i32
    return %arg1, %c0_i32, %arg0 : i32, i32, i32
  }
  func.func @transform_2(%arg0: i32, %arg1: i32) -> (i32, i32, i32) {
    %c0_i32 = arith.constant 0 : i32
    %c0_i32_0 = arith.constant 0 : i32
    return %arg1, %c0_i32, %arg0 : i32, i32, i32
  }
}

</mosaic_0001>

<llo_original>
// kernel: tpu_custom_call.1
$region0: #{tpu_custom_call.1}
  #allocation0 [shape = 'u32[]', space=smem, size = 0x4, offset = 0x4, fixed_abs, tag = 'smem constant byte address 0x4 - core index']
  #allocation1 [shape = 'u32[144,128]{1,0:T(1,128)}', space=vmem, size = 0x12000, scoped, tag = 'internal scratch']
  %s0 = inlined_call_operand.vmem [shape: f32[2,4,1], index: 0, kind: input, shape index: {}]
  %s1 = inlined_call_operand.hbm [shape: f32[2,4,256], index: 1, kind: input, shape index: {}]
  %s2 = inlined_call_operand.hbm [shape: f32[2,1,256], index: 2, kind: output, shape index: {}]
  %s3 = sld [smem:[#allocation0]]
  $region45: #{tpu_custom_call.1} parent=0
    _
  %s5 = ssub.s32 1, %s3
  %s6 = scalar_select 0, %s5, %s3
  $region1: #{tpu_custom_call.1} parent=0
    #allocation2 [shape = 'u8[8192]{0}', space=vmem, size = 0x2000, scoped, tag = 'input window, operand 1']
    #allocation3 [shape = 's32[2]{0}', space=sflag, size = 0x8, scoped, tag = 'scoped memory for tpu_custom_call.1']
    #allocation4 [shape = 's32[2]{0}', space=sflag, size = 0x8, scoped, tag = 'scoped memory for tpu_custom_call.1']
    #allocation5 [shape = 'u8[2048]{0}', space=vmem, size = 0x800, scoped, tag = 'output window, operand 0']
    %7 = vsyncpa [#allocation3], 0
    %s8 = scalar_lea.sflag [#allocation3], 1
    %9 = vsyncpa %s8, 0
    %10 = vsyncpa [#allocation4], 0
    %s11 = scalar_lea.sflag [#allocation4], 1
    %12 = vsyncpa %s11, 0
    loop: start=0, step=1, limit=4
    $region2: #{tpu_custom_call.1} parent=1 // loop_pre_header
      _
    $region3: #{tpu_custom_call.1} parent=1 // loop_header
      %s14 = sphi 0, %s18
      %p15 = scmp.ge.s32.totalorder %s14, 4
      %s21 = sphi 0, %s33
      %s22 = sphi 0, %s29
      %s23 = sphi 0, %s21
      %s24 = sphi 0, %s22
      %s25 = sphi 0, %s23
      %s26 = sphi 0, %s24
      %s36 = sphi 0, %s38
      %s39 = sphi 0, %s36
      %s40 = sphi 0, %s39
      %s56 = sphi 0, %s40
      %s64 = sphi 0, %s66
      %s67 = sphi 0, %s64
      %s68 = sphi 0, %s67
      %s84 = sphi 0, %s68
      %s92 = sphi 0, %s94
      %s95 = sphi 0, %s92
      %s96 = sphi 0, %s95
      %s112 = sphi 0, %s96
    $region4: #{tpu_custom_call.1} parent=1 // loop_header_branch
      %17 = sbr.rel (%p15) target = $region8
    $region5: #{tpu_custom_call.1} parent=1 // loop_body
      %s19 = ssub.s32 %s14, 1
      %s20 = ssub.s32 %s14, 2
      %s27 = sadd.s32 1, %s22
      %p28 = scmp.ge.s32.totalorder %s27, 2
      %s29 = scalar_select %p28, 0, %s27
      %s30 = sadd.s32 1, %s21
      %s31 = scalar_select %p28, %s30, %s21
      %p32 = scmp.ge.s32.totalorder %s31, 1
      %s33 = scalar_select %p32, 0, %s31
      %s34 = ssub.s32 %s22, %s29
      %p35 = scmp.eq.s32.totalorder %s34, 0
      %s37 = sadd.s32 %s36, 1
      %s38 = scalar_select %p35, %s36, %s37
      %p41 = pneg %p35
      %p42 = scmp.eq.s32.totalorder %s14, 1
      %p43 = por %p41, %p42
      %p44 = scmp.ne.s32.totalorder %s36, %s39
      %p45 = scmp.eq.s32.totalorder %s14, 0
      %p46 = por %p44, %p45
      %p47 = scmp.ne.s32.totalorder %s36, %s39
      %p48 = scmp.eq.s32.totalorder %s19, 1
      %p49 = por %p47, %p48
      %p50 = scmp.ne.s32.totalorder %s39, %s40
      %p51 = scmp.eq.s32.totalorder %s19, 0
      %p52 = por %p50, %p51
      %p53 = scmp.ne.s32.totalorder %s39, %s40
      %p54 = scmp.eq.s32.totalorder %s20, 1
      %p55 = por %p53, %p54
      %p57 = scmp.ne.s32.totalorder %s40, %s56
      %p58 = scmp.eq.s32.totalorder %s20, 0
      %p59 = por %p57, %p58
      %s60 = ssub.s32 %s22, %s29
      %s61 = ssub.s32 %s21, %s33
      %s62 = sor.u32 %s60, %s61
      %p63 = scmp.eq.s32.totalorder %s62, 0
      %s65 = sadd.s32 %s64, 1
      %s66 = scalar_select %p63, %s64, %s65
      %p69 = pneg %p63
      %p70 = scmp.eq.s32.totalorder %s14, 1
      %p71 = por %p69, %p70
      %p72 = scmp.ne.s32.totalorder %s64, %s67
      %p73 = scmp.eq.s32.totalorder %s14, 0
      %p74 = por %p72, %p73
      %p75 = scmp.ne.s32.totalorder %s64, %s67
      %p76 = scmp.eq.s32.totalorder %s19, 1
      %p77 = por %p75, %p76
      %p78 = scmp.ne.s32.totalorder %s67, %s68
      %p79 = scmp.eq.s32.totalorder %s19, 0
      %p80 = por %p78, %p79
      %p81 = scmp.ne.s32.totalorder %s67, %s68
      %p82 = scmp.eq.s32.totalorder %s20, 1
      %p83 = por %p81, %p82
      %p85 = scmp.ne.s32.totalorder %s68, %s84
      %p86 = scmp.eq.s32.totalorder %s20, 0
      %p87 = por %p85, %p86
      %s88 = ssub.s32 %s22, %s29
      %s89 = ssub.s32 %s21, %s33
      %s90 = sor.u32 %s88, %s89
      %p91 = scmp.eq.s32.totalorder %s90, 0
      %s93 = sadd.s32 %s92, 1
      %s94 = scalar_select %p91, %s92, %s93
      %p97 = pneg %p91
      %p98 = scmp.eq.s32.totalorder %s14, 1
      %p99 = por %p97, %p98
      %p100 = scmp.ne.s32.totalorder %s92, %s95
      %p101 = scmp.eq.s32.totalorder %s14, 0
      %p102 = por %p100, %p101
      %p103 = scmp.ne.s32.totalorder %s92, %s95
      %p104 = scmp.eq.s32.totalorder %s19, 1
      %p105 = por %p103, %p104
      %p106 = scmp.ne.s32.totalorder %s95, %s96
      %p107 = scmp.eq.s32.totalorder %s19, 0
      %p108 = por %p106, %p107
      %p109 = scmp.ne.s32.totalorder %s95, %s96
      %p110 = scmp.eq.s32.totalorder %s20, 1
      %p111 = por %p109, %p110
      %p113 = scmp.ne.s32.totalorder %s96, %s112
      %p114 = scmp.eq.s32.totalorder %s20, 0
      %p115 = por %p113, %p114
      %p116 = scmp.le.s32.totalorder 1, %s14
      %p117 = scmp.lt.s32.totalorder %s14, 3
      %p118 = pnand %p116, %p117
      %p119 = pneg %p118
      // Predicated region
      $region9: #{tpu_custom_call.1} parent=5 // pred_check
        _
      $region10: #{tpu_custom_call.1} parent=5 // pred_check_branch
        %121 = sbr.rel (%p118) target = $region12
      $region11: #{tpu_custom_call.1} parent=5 // pred_region
        %s122 = ssub.s32 %s14, 1
      $region12: #{tpu_custom_call.1} parent=5 // pred_fallthru
        _
      %p123 = scmp.lt.s32.totalorder %s14, 2
      // Predicated region
      $region13: #{tpu_custom_call.1} parent=5 // pred_check
        %p124 = pneg %p123
      $region14: #{tpu_custom_call.1} parent=5 // pred_check_branch
        %126 = sbr.rel (%p124) target = $region16
      $region15: #{tpu_custom_call.1} parent=5 // pred_region
        // Predicated region
        $region17: #{tpu_custom_call.1} parent=15 // pred_check
          %p127 = pneg %p46
        $region18: #{tpu_custom_call.1} parent=15 // pred_check_branch
          %129 = sbr.rel (%p127) target = $region20
        $region19: #{tpu_custom_call.1} parent=15 // pred_region
          %p130 = scmp.lt.s32.totalorder %s22, 1
          %s131 = scalar_select %p130, %s22, 1
          %s132 = smul.addr %s131, 4
          %s133 = scalar_lea.vmem %s0, %s132
        $region20: #{tpu_custom_call.1} parent=15 // pred_fallthru
          _
        // Predicated region
        $region21: #{tpu_custom_call.1} parent=15 // pred_check
          %p134 = pneg %p74
        $region22: #{tpu_custom_call.1} parent=15 // pred_check_branch
          %136 = sbr.rel (%p134) target = $region24
        $region23: #{tpu_custom_call.1} parent=15 // pred_region
          %s137 = sand.u32 %s64, 1
          %s138 = scalar_lea.sflag [#allocation3], %s137
          %s139 = sand.u32 %s64, 1
          %s140 = smul.addr %s139, 8
          %s141 = scalar_lea.vmem [#allocation2], %s140
          %s142 = smul.u32 2, %s21
          %s144 = ssub.s32 128, 128
          %145 = vsyncadd %s138, %s144
          %s146 = smul.addr %s22, 2
          %s147 = sadd.s32 %s142, %s146
          %s148 = smul.addr %s147, 64
          %s149 = scalar_lea.hbm %s1, %s148
          %s151 = sshll.u32 %s141, 4
          %s152 = int_to_ptr.vmem [resolvable:$true] %s151
          %154 = dma.hbm_to_vmem [thread:$0]  %s149, 128, %s152, %s138
        $region24: #{tpu_custom_call.1} parent=15 // pred_fallthru
          _
      $region16: #{tpu_custom_call.1} parent=5 // pred_fallthru
        _
      %p155 = scmp.le.s32.totalorder 1, %s14
      %p156 = scmp.lt.s32.totalorder %s14, 3
      %p157 = pnand %p155, %p156
      %p158 = pneg %p157
      // Predicated region
      $region25: #{tpu_custom_call.1} parent=5 // pred_check
        _
      $region26: #{tpu_custom_call.1} parent=5 // pred_check_branch
        %160 = sbr.rel (%p157) target = $region28
      $region27: #{tpu_custom_call.1} parent=5 // pred_region
        %s161 = ssub.s32 %s14, 1
        %s162 = sand.u32 %s67, 1
        %s163 = scalar_lea.sflag [#allocation3], %s162
        %s164 = sand.u32 %s67, 1
        %s165 = smul.addr %s164, 8
        %s166 = scalar_lea.vmem [#allocation2], %s165
        // Predicated region
        $region29: #{tpu_custom_call.1} parent=27 // pred_check
          %p167 = pneg %p80
        $region30: #{tpu_custom_call.1} parent=27 // pred_check_branch
          %169 = sbr.rel (%p167) target = $region32
        $region31: #{tpu_custom_call.1} parent=27 // pred_region
          %170 = dma.done %s163, 128
        $region32: #{tpu_custom_call.1} parent=27 // pred_fallthru
          _
        %p171 = scmp.lt.s32.totalorder %s24, 1
        %s172 = scalar_select %p171, %s24, 1
        %s173 = smul.addr %s172, 4
        %s174 = scalar_lea.vmem %s0, %s173
        %p175 = pneg %p52
        %p176 = pneg %p49
        %s177 = sand.u32 %s67, 1
        %s178 = scalar_lea.sflag [#allocation3], %s177
        %s179 = sand.u32 %s67, 1
        %s180 = smul.addr %s179, 8
        %s181 = scalar_lea.vmem [#allocation2], %s180
        %p182 = pneg %p80
        %p183 = pneg %p77
        %p184 = pneg %p108
        %p185 = pneg %p105
        %s186 = sand.u32 %s95, 1
        %s187 = scalar_lea.sflag [#allocation4], %s186
        %s188 = sand.u32 %s95, 1
        %s189 = smul.addr %s188, 2
        %s190 = scalar_lea.vmem [#allocation5], %s189
        %p191 = scmp.lt.s32.totalorder %s24, 1
        %s192 = scalar_select %p191, %s24, 1
        %s193 = smul.addr %s192, 4
        %s194 = scalar_lea.vmem %s0, %s193
        %s195 = smul.u32 2, %s23
        %s196 = smul.u32 2, %s23
        %v197 = vld [vmem:[%s194] sm:$0xf]
        %v198 = vld [vmem:[%s166] sm:$0xff]
        %200 = vset.pattern.permute.xlu0 0
        %201 = vperm.xlu0 %200, %v197
        %v202 = vpop.permute.xlu0 %201
        %v204 = vunpack.c.l.s4 839922192
        %v205 = vunpack.c.0.s8 %v204
        %v206 = vlaneseq
        %v207 = vshrl.u32 %v206, 7
        %v208 = vsub.s32 %v205, %v207
        %v209 = vrot.slane %v202, %v208
        %v211 = vmul.f32 %v198, %v209
        %v213 = vcombine.high %v211, %v211
        %vm215 = vcmask 1043456
        %v216 = vsel %vm215, %v211, 0.0
        %v217 = vrot.slane %v216, 4
        %v218 = vadd.f32 %v216, %v217
        %v219 = vrot.slane %v218, 2
        %v220 = vadd.f32 %v218, %v219
        %v221 = vrot.slane %v220, 1
        %v222 = vadd.f32 %v220, %v221
        %v223 = vsel %vm215, %v213, 0.0
        %v224 = vrot.slane %v223, 4
        %v225 = vadd.f32 %v223, %v224
        %v226 = vrot.slane %v225, 2
        %v227 = vadd.f32 %v225, %v226
        %v228 = vrot.slane %v227, 1
        %v229 = vadd.f32 %v227, %v228
        %v232 = vcombine.low %v222, %v229
        %v234 = vunpack.c.l.s4 1966171168
        %v235 = vunpack.c.0.s8 %v234
        %v236 = vlaneseq
        %v237 = vshrl.u32 %v236, 7
        %v238 = vsub.s32 %v235, %v237
        %v239 = vrot.slane %v232, %v238
        %v241 = vunpack.c.l.s4 1966171168
        %v242 = vunpack.c.0.s8 %v241
        %v243 = vlaneseq
        %v244 = vshrl.u32 %v243, 7
        %v245 = vsub.s32 %v242, %v244
        %v246 = vrot.slane %v239, %v245
        %v248 = vlaneseq
        %vm249 = vcmp.ge.s32.totalorder %v248, 0
        %vm250 = vcmp.lt.s32.totalorder %v248, 256
        %vm251 = vmand %vm249, %vm250
        %252 = vst.msk [vmem:[%s190] sm:$0x3] %vm251, %v246
        %s253 = sand.u32 %s95, 1
        %s254 = scalar_lea.sflag [#allocation4], %s253
        %s255 = sand.u32 %s95, 1
        %s256 = smul.addr %s255, 2
        %s257 = scalar_lea.vmem [#allocation5], %s256
        // Predicated region
        $region33: #{tpu_custom_call.1} parent=27 // pred_check
          %p258 = pneg %p105
        $region34: #{tpu_custom_call.1} parent=27 // pred_check_branch
          %260 = sbr.rel (%p258) target = $region36
        $region35: #{tpu_custom_call.1} parent=27 // pred_region
          %s261 = smul.u32 2, %s23
          %s263 = ssub.s32 32, 32
          %264 = vsyncadd %s254, %s263
          %s265 = smul.addr %s24, 2
          %s266 = sadd.s32 %s261, %s265
          %s267 = smul.addr %s266, 16
          %s268 = scalar_lea.hbm %s2, %s267
          %s270 = sshll.u32 %s257, 4
          %s271 = int_to_ptr.vmem [resolvable:$true] %s270
          %273 = dma.vmem_to_hbm [thread:$0]  %s271, 32, %s268, %s254
        $region36: #{tpu_custom_call.1} parent=27 // pred_fallthru
          _
      $region28: #{tpu_custom_call.1} parent=5 // pred_fallthru
        _
      %p274 = scmp.le.s32.totalorder 2, %s14
      // Predicated region
      $region37: #{tpu_custom_call.1} parent=5 // pred_check
        %p275 = pneg %p274
      $region38: #{tpu_custom_call.1} parent=5 // pred_check_branch
        %277 = sbr.rel (%p275) target = $region40
      $region39: #{tpu_custom_call.1} parent=5 // pred_region
        %s278 = ssub.s32 %s14, 2
        // Predicated region
        $region41: #{tpu_custom_call.1} parent=39 // pred_check
          %p279 = pneg %p111
        $region42: #{tpu_custom_call.1} parent=39 // pred_check_branch
          %281 = sbr.rel (%p279) target = $region44
        $region43: #{tpu_custom_call.1} parent=39 // pred_region
          %s282 = sand.u32 %s96, 1
          %s283 = scalar_lea.sflag [#allocation4], %s282
          %s284 = sand.u32 %s96, 1
          %s285 = smul.addr %s284, 2
          %s286 = scalar_lea.vmem [#allocation5], %s285
          %287 = dma.done %s283, 32
        $region44: #{tpu_custom_call.1} parent=39 // pred_fallthru
          _
      $region40: #{tpu_custom_call.1} parent=5 // pred_fallthru
        _
    $region6: #{tpu_custom_call.1} parent=1 // loop_footer
      %s18 = sadd.s32 1, %s14
    $region7: #{tpu_custom_call.1} parent=1 // loop_footer_branch
      %13 = sbr.rel target = $region3
    $region8: #{tpu_custom_call.1} parent=1 // loop_exit
      _
    %288 = vsyncpa [#allocation3], 1
    %s289 = scalar_lea.sflag [#allocation3], 1
    %290 = vsyncpa %s289, 1
    %291 = vsyncpa [#allocation4], 1
    %s292 = scalar_lea.sflag [#allocation4], 1
    %293 = vsyncpa %s292, 1

</llo_original>
